<compile_context>
chip_gen: v5e
topology: v5e:2x2
jax: 0.10.0
libtpu: 0.0.40
codegen_flags: <defaults>
</compile_context>

<pallas_src>
import functools

import jax
import jax.numpy as jnp
from jax.experimental import pallas as pl
from jax.experimental.pallas import tpu as pltpu


def mlp_kernel(x_ref, w1_ref, b1_ref, w2_ref, b2_ref, w3_ref, b3_ref, o_ref):
    # fc1 + ReLU  (MXU matmul, f32 accumulate; bias add / relu on the VPU).
    h1 = jnp.dot(x_ref[...], w1_ref[...], preferred_element_type=jnp.float32)
    h1 = jnp.maximum(h1 + b1_ref[...], 0.0)
    # fc2 + ReLU
    h2 = jnp.dot(h1, w2_ref[...], preferred_element_type=jnp.float32)
    h2 = jnp.maximum(h2 + b2_ref[...], 0.0)
    # fc3 (no activation)
    h3 = jnp.dot(h2, w3_ref[...], preferred_element_type=jnp.float32)
    o_ref[...] = (h3 + b3_ref[...]).astype(o_ref.dtype)


@functools.partial(jax.jit, static_argnames=("tile_b",))
def mlp_forward(x, w1, b1, w2, b2, w3, b3, *, tile_b=512):
    """x: (B, 240) f32.  w*: (in, out) f32, b*: (1, out) f32. Returns (B, 24)."""
    B, K = x.shape              # K = 240
    H1 = w1.shape[1]            # 128
    H2 = w2.shape[1]            # 64
    OUT = w3.shape[1]           # 24

    # Batch tile: small batches get a single full-dim tile (always legal since
    # the block dim equals the array dim); large batches stream tiles of
    # tile_b rows (multiple of 8).  With tile_b=512 and large B there are
    # >= 2 tiles, so the parallel axis can use both TensorCores on v7x.
    tb = B if B <= tile_b else tile_b
    n_tiles = pl.cdiv(B, tb)

    # Weights/biases: constant index_map -> fetched once, resident in VMEM.
    resident = lambda shape: pl.BlockSpec(shape, lambda i: (0, 0))

    out = pl.pallas_call(
        mlp_kernel,
        out_shape=jax.ShapeDtypeStruct((B, OUT), x.dtype),
        grid=(n_tiles,),
        in_specs=[
            pl.BlockSpec((tb, K), lambda i: (i, 0)),   # x streams over batch
            resident((K, H1)),  resident((1, H1)),
            resident((H1, H2)), resident((1, H2)),
            resident((H2, OUT)), resident((1, OUT)),
        ],
        out_specs=pl.BlockSpec((tb, OUT), lambda i: (i, 0)),
        compiler_params=pltpu.CompilerParams(
            dimension_semantics=("parallel",)),
    )(x, w1, b1, w2, b2, w3, b3)

    return out


def init_linear_params(key, in_features, out_features):
    """Deterministic init mimicking PyTorch nn.Linear default
    (uniform +/- 1/sqrt(fan_in)). Returns W of shape (in, out) (pre-transposed)
    and b of shape (1, out)."""
    kw, kb = jax.random.split(key)
    bound = 1.0 / jnp.sqrt(jnp.float32(in_features))
    w = jax.random.uniform(kw, (in_features, out_features), jnp.float32,
                           minval=-bound, maxval=bound)
    b = jax.random.uniform(kb, (1, out_features), jnp.float32,
                           minval=-bound, maxval=bound)
    return w, b


def _reference(x, w1, b1, w2, b2, w3, b3):
    h = jnp.maximum(x @ w1 + b1, 0.0)
    h = jnp.maximum(h @ w2 + b2, 0.0)
    return h @ w3 + b3


if __name__ == "__main__":
    key = jax.random.PRNGKey(0)
    kx, k1, k2, k3, kx2 = jax.random.split(key, 5)

    w1, b1 = init_linear_params(k1, 240, 128)
    w2, b2 = init_linear_params(k2, 128, 64)
    w3, b3 = init_linear_params(k3, 64, 24)

    # Small batch: single full-dim tile.
    B = 8
    x = jax.random.normal(kx, (B, 240), jnp.float32)
    out = mlp_forward(x, w1, b1, w2, b2, w3, b3)
    out = jax.block_until_ready(out)
    ref = _reference(x, w1, b1, w2, b2, w3, b3)
    assert out.shape == (B, 24)
    assert jnp.allclose(out, ref, atol=1e-4, rtol=1e-4)

    # Larger batch exercising multiple tiles + a ragged last tile (no padding).
    B2 = 600
    x2 = jax.random.normal(kx2, (B2, 240), jnp.float32)
    out2 = mlp_forward(x2, w1, b1, w2, b2, w3, b3, tile_b=256)
    out2 = jax.block_until_ready(out2)
    ref2 = _reference(x2, w1, b1, w2, b2, w3, b3)
    assert out2.shape == (B2, 24)
    assert jnp.allclose(out2, ref2, atol=1e-4, rtol=1e-4)

    print("KERNEL_OK")
</pallas_src>

<mosaic_0001>
module attributes {stable_mosaic.version = 11 : i64} {
  func.func @mlp_kernel(%arg0: i32, %arg1: memref<8x240xf32, #tpu.memory_space<vmem>>, %arg2: memref<240x128xf32, #tpu.memory_space<vmem>>, %arg3: memref<1x128xf32, #tpu.memory_space<vmem>>, %arg4: memref<128x64xf32, #tpu.memory_space<vmem>>, %arg5: memref<1x64xf32, #tpu.memory_space<vmem>>, %arg6: memref<64x24xf32, #tpu.memory_space<vmem>>, %arg7: memref<1x24xf32, #tpu.memory_space<vmem>>, %arg8: memref<8x24xf32, #tpu.memory_space<vmem>>) attributes {dimension_semantics = [#tpu.dimension_semantics<parallel>], iteration_bounds = array<i64: 1>, scalar_prefetch = 0 : i64, scratch_operands = 0 : i64, tpu.core_type = #tpu.core_type<tc>, window_params = [{transform_indices = @transform_0, window_bounds = array<i64: 8, 240>}, {pipeline_mode = #tpu.pipeline_mode<synchronous>, transform_indices = @transform_1, window_bounds = array<i64: 240, 128>}, {pipeline_mode = #tpu.pipeline_mode<synchronous>, transform_indices = @transform_2, window_bounds = array<i64: 1, 128>}, {pipeline_mode = #tpu.pipeline_mode<synchronous>, transform_indices = @transform_3, window_bounds = array<i64: 128, 64>}, {pipeline_mode = #tpu.pipeline_mode<synchronous>, transform_indices = @transform_4, window_bounds = array<i64: 1, 64>}, {pipeline_mode = #tpu.pipeline_mode<synchronous>, transform_indices = @transform_5, window_bounds = array<i64: 64, 24>}, {pipeline_mode = #tpu.pipeline_mode<synchronous>, transform_indices = @transform_6, window_bounds = array<i64: 1, 24>}, {transform_indices = @transform_7, window_bounds = array<i64: 8, 24>}]} {
    %c0 = arith.constant 0 : index
    %c0_0 = arith.constant 0 : index
    %0 = vector.load %arg1[%c0, %c0_0] : memref<8x240xf32, #tpu.memory_space<vmem>>, vector<8x240xf32>
    %c0_1 = arith.constant 0 : index
    %c0_2 = arith.constant 0 : index
    %1 = vector.load %arg2[%c0_1, %c0_2] : memref<240x128xf32, #tpu.memory_space<vmem>>, vector<240x128xf32>
    %cst = arith.constant dense<0.000000e+00> : vector<8x128xf32>
    %2 = tpu.matmul %0, %1, %cst {dimension_numbers = #tpu.dot_dimension_numbers<[1], [0], [0], [1], [0, 0, 1, 1], [], []>} : vector<8x240xf32>, vector<240x128xf32>, vector<8x128xf32> -> vector<8x128xf32>
    %c0_3 = arith.constant 0 : index
    %c0_4 = arith.constant 0 : index
    %3 = vector.load %arg3[%c0_3, %c0_4] : memref<1x128xf32, #tpu.memory_space<vmem>>, vector<1x128xf32>
    %4 = vector.broadcast %3 : vector<1x128xf32> to vector<8x128xf32>
    %5 = arith.addf %2, %4 : vector<8x128xf32>
    %cst_5 = arith.constant 0.000000e+00 : f32
    %6 = vector.broadcast %cst_5 : f32 to vector<8x128xf32>
    %7 = arith.maximumf %5, %6 : vector<8x128xf32>
    %c0_6 = arith.constant 0 : index
    %c0_7 = arith.constant 0 : index
    %8 = vector.load %arg4[%c0_6, %c0_7] : memref<128x64xf32, #tpu.memory_space<vmem>>, vector<128x64xf32>
    %cst_8 = arith.constant dense<0.000000e+00> : vector<8x64xf32>
    %9 = tpu.matmul %7, %8, %cst_8 {dimension_numbers = #tpu.dot_dimension_numbers<[1], [0], [0], [1], [0, 0, 1, 1], [], []>} : vector<8x128xf32>, vector<128x64xf32>, vector<8x64xf32> -> vector<8x64xf32>
    %c0_9 = arith.constant 0 : index
    %c0_10 = arith.constant 0 : index
    %10 = vector.load %arg5[%c0_9, %c0_10] : memref<1x64xf32, #tpu.memory_space<vmem>>, vector<1x64xf32>
    %11 = vector.broadcast %10 : vector<1x64xf32> to vector<8x64xf32>
    %12 = arith.addf %9, %11 : vector<8x64xf32>
    %cst_11 = arith.constant 0.000000e+00 : f32
    %13 = vector.broadcast %cst_11 : f32 to vector<8x64xf32>
    %14 = arith.maximumf %12, %13 : vector<8x64xf32>
    %c0_12 = arith.constant 0 : index
    %c0_13 = arith.constant 0 : index
    %15 = vector.load %arg6[%c0_12, %c0_13] : memref<64x24xf32, #tpu.memory_space<vmem>>, vector<64x24xf32>
    %cst_14 = arith.constant dense<0.000000e+00> : vector<8x24xf32>
    %16 = tpu.matmul %14, %15, %cst_14 {dimension_numbers = #tpu.dot_dimension_numbers<[1], [0], [0], [1], [0, 0, 1, 1], [], []>} : vector<8x64xf32>, vector<64x24xf32>, vector<8x24xf32> -> vector<8x24xf32>
    %c0_15 = arith.constant 0 : index
    %c0_16 = arith.constant 0 : index
    %17 = vector.load %arg7[%c0_15, %c0_16] : memref<1x24xf32, #tpu.memory_space<vmem>>, vector<1x24xf32>
    %18 = vector.broadcast %17 : vector<1x24xf32> to vector<8x24xf32>
    %19 = arith.addf %16, %18 : vector<8x24xf32>
    %c0_17 = arith.constant 0 : index
    %c0_18 = arith.constant 0 : index
    %20 = vector.load %arg8[%c0_17, %c0_18] : memref<8x24xf32, #tpu.memory_space<vmem>>, vector<8x24xf32>
    tpu.vector_store %arg8[%c0_17, %c0_18], %19 {strides = array<i32>} : memref<8x24xf32, #tpu.memory_space<vmem>>, vector<8x24xf32>,
    return
  }
  func.func @transform_0(%arg0: i32) -> (i32, i32) {
    %c0_i32 = arith.constant 0 : i32
    %c0_i32_0 = arith.constant 0 : i32
    return %arg0, %c0_i32 : i32, i32
  }
  func.func @transform_1(%arg0: i32) -> (i32, i32) {
    %c0_i32 = arith.constant 0 : i32
    %c0_i32_0 = arith.constant 0 : i32
    %c0_i32_1 = arith.constant 0 : i32
    return %c0_i32, %c0_i32_0 : i32, i32
  }
  func.func @transform_2(%arg0: i32) -> (i32, i32) {
    %c0_i32 = arith.constant 0 : i32
    %c0_i32_0 = arith.constant 0 : i32
    %c0_i32_1 = arith.constant 0 : i32
    return %c0_i32, %c0_i32_0 : i32, i32
  }
  func.func @transform_3(%arg0: i32) -> (i32, i32) {
    %c0_i32 = arith.constant 0 : i32
    %c0_i32_0 = arith.constant 0 : i32
    %c0_i32_1 = arith.constant 0 : i32
    return %c0_i32, %c0_i32_0 : i32, i32
  }
  func.func @transform_4(%arg0: i32) -> (i32, i32) {
    %c0_i32 = arith.constant 0 : i32
    %c0_i32_0 = arith.constant 0 : i32
    %c0_i32_1 = arith.constant 0 : i32
    return %c0_i32, %c0_i32_0 : i32, i32
  }
  func.func @transform_5(%arg0: i32) -> (i32, i32) {
    %c0_i32 = arith.constant 0 : i32
    %c0_i32_0 = arith.constant 0 : i32
    %c0_i32_1 = arith.constant 0 : i32
    return %c0_i32, %c0_i32_0 : i32, i32
  }
  func.func @transform_6(%arg0: i32) -> (i32, i32) {
    %c0_i32 = arith.constant 0 : i32
    %c0_i32_0 = arith.constant 0 : i32
    %c0_i32_1 = arith.constant 0 : i32
    return %c0_i32, %c0_i32_0 : i32, i32
  }
  func.func @transform_7(%arg0: i32) -> (i32, i32) {
    %c0_i32 = arith.constant 0 : i32
    %c0_i32_0 = arith.constant 0 : i32
    return %arg0, %c0_i32 : i32, i32
  }
}

</mosaic_0001>

<llo_original>
// kernel: mlp_forward.1
$region0: #{mlp_forward.1}
  #allocation0 [shape = 'u32[]', space=smem, size = 0x4, offset = 0x4, fixed_abs, tag = 'smem constant byte address 0x4 - core index']
  #allocation1 [shape = 'u32[72,128]{1,0:T(1,128)}', space=vmem, size = 0x9000, scoped, tag = 'internal scratch']
  %s0 = inlined_call_operand.vmem [shape: f32[8,240], index: 0, kind: input, shape index: {}]
  %s1 = inlined_call_operand.hbm [shape: f32[240,128], index: 1, kind: input, shape index: {}]
  %s2 = inlined_call_operand.vmem [shape: f32[1,128], index: 2, kind: input, shape index: {}]
  %s3 = inlined_call_operand.vmem [shape: f32[128,64], index: 3, kind: input, shape index: {}]
  %s4 = inlined_call_operand.vmem [shape: f32[1,64], index: 4, kind: input, shape index: {}]
  %s5 = inlined_call_operand.vmem [shape: f32[64,24], index: 5, kind: input, shape index: {}]
  %s6 = inlined_call_operand.vmem [shape: f32[1,24], index: 6, kind: input, shape index: {}]
  %s7 = inlined_call_operand.hbm [shape: f32[8,24], index: 7, kind: output, shape index: {}]
  %s8 = sld [smem:[#allocation0]]
  $region42: #{mlp_forward.1} parent=0
    _
  %s10 = ssub.s32 1, %s8
  %s11 = scalar_select 0, %s10, %s8
  $region1: #{mlp_forward.1} parent=0
    #allocation2 [shape = 'u8[122880]{0}', space=vmem, size = 0x1e000, scoped, tag = 'input window, operand 1, single buffered']
    #allocation3 [shape = 's32[1]{0}', space=sflag, size = 0x4, scoped, tag = 'scoped memory for mlp_forward.1']
    #allocation4 [shape = 's32[1]{0}', space=sflag, size = 0x4, scoped, tag = 'scoped memory for mlp_forward.1']
    #allocation5 [shape = 'u8[4096]{0}', space=vmem, size = 0x1000, scoped, tag = 'output window, operand 0, single buffered']
    %12 = vsyncpa [#allocation3], 0
    %13 = vsyncpa [#allocation4], 0
    // Predicated region
    $region2: #{mlp_forward.1} parent=1 // pred_check
      _
    $region3: #{mlp_forward.1} parent=1 // pred_check_branch
      %15 = sbr.rel (0) target = $region5
    $region4: #{mlp_forward.1} parent=1 // pred_region
      _
    $region5: #{mlp_forward.1} parent=1 // pred_fallthru
      _
    // Predicated region
    $region6: #{mlp_forward.1} parent=1 // pred_check
      _
    $region7: #{mlp_forward.1} parent=1 // pred_check_branch
      %17 = sbr.rel (0) target = $region9
    $region8: #{mlp_forward.1} parent=1 // pred_region
      %19 = vsyncadd [#allocation3], 0
      %s20 = sshll.u32 %s1, 4
      %s21 = int_to_ptr.hbm [resolvable:$true] %s20
      %s22 = sshll.u32 [#allocation2], 4
      %s23 = int_to_ptr.vmem [resolvable:$true] %s22
      %28 = dma.hbm_to_vmem [thread:$0]  %s21, 3840, %s23, [#allocation3], 128, 128, 8
    $region9: #{mlp_forward.1} parent=1 // pred_fallthru
      _
    // Predicated region
    $region10: #{mlp_forward.1} parent=1 // pred_check
      _
    $region11: #{mlp_forward.1} parent=1 // pred_check_branch
      %30 = sbr.rel (0) target = $region13
    $region12: #{mlp_forward.1} parent=1 // pred_region
      _
    $region13: #{mlp_forward.1} parent=1 // pred_fallthru
      _
    // Predicated region
    $region14: #{mlp_forward.1} parent=1 // pred_check
      _
    $region15: #{mlp_forward.1} parent=1 // pred_check_branch
      %32 = sbr.rel (0) target = $region17
    $region16: #{mlp_forward.1} parent=1 // pred_region
      _
    $region17: #{mlp_forward.1} parent=1 // pred_fallthru
      _
    // Predicated region
    $region18: #{mlp_forward.1} parent=1 // pred_check
      _
    $region19: #{mlp_forward.1} parent=1 // pred_check_branch
      %34 = sbr.rel (0) target = $region21
    $region20: #{mlp_forward.1} parent=1 // pred_region
      _
    $region21: #{mlp_forward.1} parent=1 // pred_fallthru
      _
    // Predicated region
    $region22: #{mlp_forward.1} parent=1 // pred_check
      _
    $region23: #{mlp_forward.1} parent=1 // pred_check_branch
      %36 = sbr.rel (0) target = $region25
    $region24: #{mlp_forward.1} parent=1 // pred_region
      _
    $region25: #{mlp_forward.1} parent=1 // pred_fallthru
      _
    // Predicated region
    $region26: #{mlp_forward.1} parent=1 // pred_check
      _
    $region27: #{mlp_forward.1} parent=1 // pred_check_branch
      %38 = sbr.rel (0) target = $region29
    $region28: #{mlp_forward.1} parent=1 // pred_region
      _
    $region29: #{mlp_forward.1} parent=1 // pred_fallthru
      _
    // Predicated region
    $region30: #{mlp_forward.1} parent=1 // pred_check
      _
    $region31: #{mlp_forward.1} parent=1 // pred_check_branch
      %40 = sbr.rel (0) target = $region33
    $region32: #{mlp_forward.1} parent=1 // pred_region
      %42 = dma.done [#allocation3], 3840
    $region33: #{mlp_forward.1} parent=1 // pred_fallthru
      _
    %v43 = vld [vmem:[%s0] sm:$0xff]
    %v44 = vld [vmem:[%s0 + $0x8] sm:$0xff]
    %v45 = vld [vmem:[#allocation2] sm:$0xff]
    %v46 = vld [vmem:[#allocation2 + $0x8] sm:$0xff]
    %v47 = vld [vmem:[#allocation2 + $0x10] sm:$0xff]
    %v48 = vld [vmem:[#allocation2 + $0x18] sm:$0xff]
    %v49 = vld [vmem:[#allocation2 + $0x20] sm:$0xff]
    %v50 = vld [vmem:[#allocation2 + $0x28] sm:$0xff]
    %v51 = vld [vmem:[#allocation2 + $0x30] sm:$0xff]
    %v52 = vld [vmem:[#allocation2 + $0x38] sm:$0xff]
    %v53 = vld [vmem:[#allocation2 + $0x40] sm:$0xff]
    %v54 = vld [vmem:[#allocation2 + $0x48] sm:$0xff]
    %v55 = vld [vmem:[#allocation2 + $0x50] sm:$0xff]
    %v56 = vld [vmem:[#allocation2 + $0x58] sm:$0xff]
    %v57 = vld [vmem:[#allocation2 + $0x60] sm:$0xff]
    %v58 = vld [vmem:[#allocation2 + $0x68] sm:$0xff]
    %v59 = vld [vmem:[#allocation2 + $0x70] sm:$0xff]
    %v60 = vld [vmem:[#allocation2 + $0x78] sm:$0xff]
    %v61 = vld [vmem:[#allocation2 + $0x80] sm:$0xff]
    %v62 = vld [vmem:[#allocation2 + $0x88] sm:$0xff]
    %v63 = vld [vmem:[#allocation2 + $0x90] sm:$0xff]
    %v64 = vld [vmem:[#allocation2 + $0x98] sm:$0xff]
    %v65 = vld [vmem:[#allocation2 + $0xa0] sm:$0xff]
    %v66 = vld [vmem:[#allocation2 + $0xa8] sm:$0xff]
    %v67 = vld [vmem:[#allocation2 + $0xb0] sm:$0xff]
    %v68 = vld [vmem:[#allocation2 + $0xb8] sm:$0xff]
    %v69 = vld [vmem:[#allocation2 + $0xc0] sm:$0xff]
    %v70 = vld [vmem:[#allocation2 + $0xc8] sm:$0xff]
    %v71 = vld [vmem:[#allocation2 + $0xd0] sm:$0xff]
    %v72 = vld [vmem:[#allocation2 + $0xd8] sm:$0xff]
    %v73 = vld [vmem:[#allocation2 + $0xe0] sm:$0xff]
    %v74 = vld [vmem:[#allocation2 + $0xe8] sm:$0xff]
    %v75 = vld [vmem:[%s2] sm:$0x1]
    %v77 = vperm.slane %v75, 0
    %vm79 = vcmask 916480
    %v81 = vsel %vm79, %v44, 0
    %83 = vmatpush.msra.mxu0 %v60
    %84 = vmatpush.msra.mxu0 %v59
    %85 = vmatpush.msra.mxu0 %v58
    %86 = vmatpush.msra.mxu0 %v57
    %87 = vmatpush.msra.mxu0 %v56
    %88 = vmatpush.msra.mxu0 %v55
    %89 = vmatpush.msra.mxu0 %v54
    %90 = vmatpush.msra.mxu0 %v53
    %91 = vmatpush.msra.mxu0 %v52
    %92 = vmatpush.msra.mxu0 %v51
    %93 = vmatpush.msra.mxu0 %v50
    %94 = vmatpush.msra.mxu0 %v49
    %95 = vmatpush.msra.mxu0 %v48
    %96 = vmatpush.msra.mxu0 %v47
    %97 = vmatpush.msra.mxu0 %v46
    %98 = vmatpush.msra.mxu0 %v45
    %99 = vmatmul.f32.gmra.mxu0 %v43
    %v100 = vpop.f32.mrf.mxu0
    %v101 = vadd.f32 %v77, %v100
    %102 = vdwg.mxu0
    %103 = vmatpush.msra.mxu0 0.0
    %104 = vmatpush.msra.mxu0 0.0
    %105 = vmatpush.msra.mxu0 %v74
    %106 = vmatpush.msra.mxu0 %v73
    %107 = vmatpush.msra.mxu0 %v72
    %108 = vmatpush.msra.mxu0 %v71
    %109 = vmatpush.msra.mxu0 %v70
    %110 = vmatpush.msra.mxu0 %v69
    %111 = vmatpush.msra.mxu0 %v68
    %112 = vmatpush.msra.mxu0 %v67
    %113 = vmatpush.msra.mxu0 %v66
    %114 = vmatpush.msra.mxu0 %v65
    %115 = vmatpush.msra.mxu0 %v64
    %116 = vmatpush.msra.mxu0 %v63
    %117 = vmatpush.msra.mxu0 %v62
    %118 = vmatpush.msra.mxu0 %v61
    %119 = vmatmul.f32.gmra.mxu0 %v81
    %v120 = vpop.f32.mrf.mxu0
    %v121 = vadd.f32 %v101, %v120
    %122 = vdwg.mxu0
    %v123 = vmax.f32 %v121, 0.0
    %v124 = vld [vmem:[%s3] sm:$0xff]
    %v125 = vld [vmem:[%s3 + $0x8] sm:$0xff]
    %v126 = vld [vmem:[%s3 + $0x10] sm:$0xff]
    %v127 = vld [vmem:[%s3 + $0x18] sm:$0xff]
    %v128 = vld [vmem:[%s3 + $0x20] sm:$0xff]
    %v129 = vld [vmem:[%s3 + $0x28] sm:$0xff]
    %v130 = vld [vmem:[%s3 + $0x30] sm:$0xff]
    %v131 = vld [vmem:[%s3 + $0x38] sm:$0xff]
    %v132 = vld [vmem:[%s3 + $0x40] sm:$0xff]
    %v133 = vld [vmem:[%s3 + $0x48] sm:$0xff]
    %v134 = vld [vmem:[%s3 + $0x50] sm:$0xff]
    %v135 = vld [vmem:[%s3 + $0x58] sm:$0xff]
    %v136 = vld [vmem:[%s3 + $0x60] sm:$0xff]
    %v137 = vld [vmem:[%s3 + $0x68] sm:$0xff]
    %v138 = vld [vmem:[%s3 + $0x70] sm:$0xff]
    %v139 = vld [vmem:[%s3 + $0x78] sm:$0xff]
    %v140 = vld [vmem:[%s4] sm:$0x1]
    %v142 = vperm.slane %v140, 0
    %144 = vmatpush.msra.mxu0 %v139
    %145 = vmatpush.msra.mxu0 %v138
    %146 = vmatpush.msra.mxu0 %v137
    %147 = vmatpush.msra.mxu0 %v136
    %148 = vmatpush.msra.mxu0 %v135
    %149 = vmatpush.msra.mxu0 %v134
    %150 = vmatpush.msra.mxu0 %v133
    %151 = vmatpush.msra.mxu0 %v132
    %152 = vmatpush.msra.mxu0 %v131
    %153 = vmatpush.msra.mxu0 %v130
    %154 = vmatpush.msra.mxu0 %v129
    %155 = vmatpush.msra.mxu0 %v128
    %156 = vmatpush.msra.mxu0 %v127
    %157 = vmatpush.msra.mxu0 %v126
    %158 = vmatpush.msra.mxu0 %v125
    %159 = vmatpush.msra.mxu0 %v124
    %160 = vmatmul.f32.gmra.mxu0 %v123
    %v161 = vpop.f32.mrf.mxu0
    %v162 = vadd.f32 %v142, %v161
    %163 = vdwg.mxu0
    %v164 = vmax.f32 %v162, 0.0
    %v165 = vld [vmem:[%s5] sm:$0xff]
    %v166 = vld [vmem:[%s5 + $0x8] sm:$0xff]
    %v167 = vld [vmem:[%s5 + $0x10] sm:$0xff]
    %v168 = vld [vmem:[%s5 + $0x18] sm:$0xff]
    %v169 = vld [vmem:[%s5 + $0x20] sm:$0xff]
    %v170 = vld [vmem:[%s5 + $0x28] sm:$0xff]
    %v171 = vld [vmem:[%s5 + $0x30] sm:$0xff]
    %v172 = vld [vmem:[%s5 + $0x38] sm:$0xff]
    %v173 = vld [vmem:[%s6] sm:$0x1]
    %v175 = vperm.slane %v173, 0
    %vm177 = vcmask 523264
    %v179 = vsel %vm177, %v164, 0
    %181 = vmatpush.msra.mxu0 0.0
    %182 = vmatpush.msra.mxu0 0.0
    %183 = vmatpush.msra.mxu0 0.0
    %184 = vmatpush.msra.mxu0 0.0
    %185 = vmatpush.msra.mxu0 0.0
    %186 = vmatpush.msra.mxu0 0.0
    %187 = vmatpush.msra.mxu0 0.0
    %188 = vmatpush.msra.mxu0 0.0
    %189 = vmatpush.msra.mxu0 %v172
    %190 = vmatpush.msra.mxu0 %v171
    %191 = vmatpush.msra.mxu0 %v170
    %192 = vmatpush.msra.mxu0 %v169
    %193 = vmatpush.msra.mxu0 %v168
    %194 = vmatpush.msra.mxu0 %v167
    %195 = vmatpush.msra.mxu0 %v166
    %196 = vmatpush.msra.mxu0 %v165
    %197 = vmatmul.f32.gmra.mxu0 %v179
    %v198 = vpop.f32.mrf.mxu0
    %v199 = vadd.f32 %v175, %v198
    %200 = vdwg.mxu0
    %vm201 = vcmask 195584
    %202 = vst.msk [vmem:[#allocation5] sm:$0xff] %vm201, %v199
    // Predicated region
    $region34: #{mlp_forward.1} parent=1 // pred_check
      _
    $region35: #{mlp_forward.1} parent=1 // pred_check_branch
      %204 = sbr.rel (0) target = $region37
    $region36: #{mlp_forward.1} parent=1 // pred_region
      %206 = vsyncadd [#allocation4], 0
      %s208 = sshll.u32 [#allocation5], 4
      %s209 = int_to_ptr.vmem [resolvable:$true] %s208
      %s210 = sshll.u32 %s7, 4
      %s211 = int_to_ptr.hbm [resolvable:$true] %s210
      %213 = dma.vmem_to_hbm [thread:$0]  %s209, 128, %s211, [#allocation4]
    $region37: #{mlp_forward.1} parent=1 // pred_fallthru
      _
    // Predicated region
    $region38: #{mlp_forward.1} parent=1 // pred_check
      _
    $region39: #{mlp_forward.1} parent=1 // pred_check_branch
      %215 = sbr.rel (0) target = $region41
    $region40: #{mlp_forward.1} parent=1 // pred_region
      %217 = dma.done [#allocation4], 128
    $region41: #{mlp_forward.1} parent=1 // pred_fallthru
      _
    %218 = vsyncpa [#allocation3], 1
    %219 = vsyncpa [#allocation4], 1

</llo_original>
